<compile_context>
chip_gen: v7x
topology: tpu7x:2x2x1
jax: 0.10.0
libtpu: 0.0.40
codegen_flags: <defaults>
</compile_context>

<pallas_src>
import functools
import math

import jax
import jax.numpy as jnp
from jax.experimental import pallas as pl
from jax.experimental.pallas import tpu as pltpu


def _round_up(n, m):
    return ((n + m - 1) // m) * m


def _vmem_capacity_bytes():
    """Per-TensorCore VMEM capacity; conservative 64 MiB fallback (v7x)."""
    try:
        info = pltpu.get_tpu_info()
        cap = getattr(info, "vmem_capacity_bytes", None)
        if cap:
            return int(cap)
    except Exception:
        pass
    return 64 * 1024 * 1024


def _choose_tiles(M, d_in_p, d_hid_p, x_itemsize, w_itemsize, vmem_cap, tm_max):
    """Pick (tm, tk) so the pipelined footprint fits the VMEM budget. Prefers big tm
    (weights are re-streamed once per row tile), then big tk (fewer grid steps)."""
    SUB = 32
    budget = int(0.80 * vmem_cap)

    def footprint(tm, tk):
        f = 2 * tm * d_in_p * 2 * x_itemsize        # x tile + out tile, double-buffered
        f += tm * d_in_p * 4                        # f32 accumulator scratch
        f += 2 * 2 * d_in_p * tk * w_itemsize       # W1 + W2 chunks, double-buffered
        f += tm * tk * 4                            # h_chunk f32 temporary
        f += 16 * (d_hid_p + 4 * d_in_p) * 4        # small resident params + slop
        return f

    if d_hid_p <= 512:
        tk_candidates = (d_hid_p,)
    else:
        tk_candidates = tuple(c for c in (512, 384, 256, 128) if d_hid_p % c == 0)

    tm_hi = _round_up(min(tm_max, _round_up(M, SUB)), SUB)
    for tk in tk_candidates:
        tm = tm_hi
        while tm > SUB and footprint(tm, tk) > budget:
            tm -= SUB
        if footprint(tm, tk) <= budget:
            return tm, tk, footprint(tm, tk)
    tm, tk = SUB, min(128, d_hid_p)
    return tm, tk, footprint(tm, tk)


def _ffn_kernel(x_ref, w1_ref, b1_ref, w2_ref, b2_ref, g_ref, beta_ref,
                o_ref, acc_ref, *, d_valid, d_pad, eps):
    # grid = (row tiles i [parallel], d_hid chunks k [arbitrary, innermost]).
    k = pl.program_id(1)

    @pl.when(k == 0)
    def _():
        acc_ref[...] = jnp.zeros_like(acc_ref)

    x = x_ref[...]
    # Chunked FFN: h_k = relu(x @ W1[:, k] + b1[k]);  acc += h_k @ W2[k, :]
    h = jnp.dot(x.astype(w1_ref.dtype), w1_ref[...],
                preferred_element_type=jnp.float32)
    h = jnp.maximum(h + b1_ref[...], 0.0)
    acc_ref[...] += jnp.dot(h.astype(w2_ref.dtype), w2_ref[...],
                            preferred_element_type=jnp.float32)

    # TODO(synk): dropout is identity at inference; a training-mode mask would use
    # pltpu.prng_seed + pltpu.prng_random_bits in this epilogue.
    @pl.when(k == pl.num_programs(1) - 1)
    def _():
        # Bias + residual in f32.
        y = acc_ref[...] + b2_ref[...] + x.astype(jnp.float32)
        inv_d = jnp.float32(1.0 / d_valid)
        mean = jnp.sum(y, axis=-1, keepdims=True) * inv_d
        if d_valid == d_pad:
            dev = y - mean
            var = jnp.sum(dev * dev, axis=-1, keepdims=True) * inv_d
        else:
            # Padded lanes of y are exactly zero (zero W2 pad columns, zero b2/x pads),
            # so E[y^2] - mean^2 over the padded width with 1/d_valid is exact — no
            # per-step iota/where mask needed.
            var = jnp.sum(y * y, axis=-1, keepdims=True) * inv_d - mean * mean
        y_norm = (y - mean) * jax.lax.rsqrt(var + eps)
        o_ref[...] = (y_norm * g_ref[...] + beta_ref[...]).astype(o_ref.dtype)


def _prepare_params(w1, b1, w2, b2, gamma, beta, matmul_dtype):
    """Pad params to lane-dense shapes and cast weights to the MXU dtype, ONCE."""
    d_in, d_hid = w1.shape
    d_in_p = _round_up(d_in, 128)
    d_hid_p = _round_up(d_hid, 128)
    wd = jnp.dtype(matmul_dtype) if matmul_dtype is not None else jnp.dtype(w1.dtype)

    def pad2(a, rows, cols):
        if a.shape != (rows, cols):
            a = jnp.pad(a, ((0, rows - a.shape[0]), (0, cols - a.shape[1])))
        return a.astype(wd)

    def pad_row(a, cols):
        if a.shape[0] != cols:
            a = jnp.pad(a, (0, cols - a.shape[0]))
        return a.reshape(1, cols).astype(jnp.float32)

    params = (pad2(w1, d_in_p, d_hid_p), pad_row(b1, d_hid_p),
              pad2(w2, d_hid_p, d_in_p), pad_row(b2, d_in_p),
              pad_row(gamma, d_in_p), pad_row(beta, d_in_p))
    return params, (d_in, d_hid, d_in_p, d_hid_p)


def make_positionwise_ffn(w1, b1, w2, b2, gamma, beta, *, eps=1e-6,
                          matmul_dtype=None, tm_max=1024):
    """Builds an inference-mode FFN callable.  matmul_dtype=jnp.bfloat16 feeds the MXU
    bf16 operands (recommended on v6e/v7x); epilogue math is always f32."""
    (w1p, b1p, w2p, b2p, gp, betap), dims = _prepare_params(
        w1, b1, w2, b2, gamma, beta, matmul_dtype)
    d_in, d_hid, d_in_p, d_hid_p = dims
    w_itemsize = jnp.dtype(w1p.dtype).itemsize

    @jax.jit
    def apply(x):
        assert x.shape[-1] == d_in, (x.shape, d_in)
        lead = x.shape[:-1]
        M = math.prod(lead)
        x_itemsize = jnp.dtype(x.dtype).itemsize

        vmem_cap = _vmem_capacity_bytes()
        tm, tk, fp = _choose_tiles(M, d_in_p, d_hid_p, x_itemsize, w_itemsize,
                                   vmem_cap, tm_max)
        # Balanced row tiles: padding bounded by <32 rows (never up to tm-1).
        n_tiles = -(-M // tm)
        tm = _round_up(-(-M // n_tiles), 32)
        M_p = n_tiles * tm

        x2d = x.reshape(M, d_in)
        if (M_p, d_in_p) != (M, d_in):
            x2d = jnp.pad(x2d, ((0, M_p - M), (0, d_in_p - d_in)))

        grid = (n_tiles, d_hid_p // tk)

        def resident(shape):
            # Grid-constant operand: a second buffer would be pure VMEM waste.
            return pl.BlockSpec(shape, lambda i, k: (0, 0),
                                pipeline_mode=pl.Buffered(1))

        kernel = functools.partial(_ffn_kernel, d_valid=d_in, d_pad=d_in_p, eps=eps)

        vmem_limit = min(max(int(1.25 * fp), 16 * 1024 * 1024),
                         int(0.90 * vmem_cap))

        flops = 4 * M_p * d_in_p * d_hid_p                          # two matmuls
        bytes_accessed = (2 * M_p * d_in_p * x_itemsize             # x in + out
                          + n_tiles * 2 * d_in_p * d_hid_p * w_itemsize  # streamed W
                          + 4 * (d_hid_p + 3 * d_in_p))
        cost = pl.CostEstimate(flops=flops, transcendentals=M_p,
                               bytes_accessed=bytes_accessed)

        out = pl.pallas_call(
            kernel,
            out_shape=jax.ShapeDtypeStruct((M_p, d_in_p), x.dtype),
            grid_spec=pltpu.PrefetchScalarGridSpec(
                num_scalar_prefetch=0,
                grid=grid,
                in_specs=[
                    pl.BlockSpec((tm, d_in_p), lambda i, k: (i, 0)),   # x row tile
                    pl.BlockSpec((d_in_p, tk), lambda i, k: (0, k)),   # W1 chunk
                    pl.BlockSpec((1, tk), lambda i, k: (0, k)),        # b1 chunk
                    pl.BlockSpec((tk, d_in_p), lambda i, k: (k, 0)),   # W2 chunk
                    resident((1, d_in_p)),                             # b2
                    resident((1, d_in_p)),                             # gamma
                    resident((1, d_in_p)),                             # beta
                ],
                out_specs=pl.BlockSpec((tm, d_in_p), lambda i, k: (i, 0)),
                scratch_shapes=[pltpu.VMEM((tm, d_in_p), jnp.float32)],
            ),
            compiler_params=pltpu.CompilerParams(
                dimension_semantics=("parallel", "arbitrary"),
                vmem_limit_bytes=vmem_limit,
            ),
            cost_estimate=cost,
        )(x2d, w1p, b1p, w2p, b2p, gp, betap)

        return out[:M, :d_in].reshape(*lead, d_in)

    return apply


def positionwise_ffn(x, w1, b1, w2, b2, gamma, beta, *, eps=1e-6, matmul_dtype=None):
    """One-off convenience wrapper (prefer make_positionwise_ffn to avoid re-padding)."""
    return make_positionwise_ffn(w1, b1, w2, b2, gamma, beta,
                                 eps=eps, matmul_dtype=matmul_dtype)(x)


def _reference(x, w1, b1, w2, b2, gamma, beta, eps=1e-6):
    x32 = x.astype(jnp.float32)
    h = jnp.maximum(x32 @ w1.astype(jnp.float32) + b1.astype(jnp.float32), 0.0)
    y = h @ w2.astype(jnp.float32) + b2.astype(jnp.float32) + x32
    mean = jnp.mean(y, axis=-1, keepdims=True)
    var = jnp.mean((y - mean) ** 2, axis=-1, keepdims=True)
    return (((y - mean) * jax.lax.rsqrt(var + eps)) * gamma.astype(jnp.float32)
            + beta.astype(jnp.float32))


if __name__ == "__main__":
    key = jax.random.PRNGKey(0)

    def run_case(case_key, B, S, d_in, d_hid, matmul_dtype, tol):
        k_x, k_w1, k_b1, k_w2, k_b2, k_g, k_beta = jax.random.split(case_key, 7)
        x = jax.random.normal(k_x, (B, S, d_in), dtype=jnp.float32)
        lim1 = 1.0 / (d_in ** 0.5)
        lim2 = 1.0 / (d_hid ** 0.5)
        w1 = jax.random.uniform(k_w1, (d_in, d_hid), minval=-lim1, maxval=lim1,
                                dtype=jnp.float32)
        b1 = jax.random.uniform(k_b1, (d_hid,), minval=-lim1, maxval=lim1,
                                dtype=jnp.float32)
        w2 = jax.random.uniform(k_w2, (d_hid, d_in), minval=-lim2, maxval=lim2,
                                dtype=jnp.float32)
        b2 = jax.random.uniform(k_b2, (d_in,), minval=-lim2, maxval=lim2,
                                dtype=jnp.float32)
        gamma = 1.0 + 0.1 * jax.random.normal(k_g, (d_in,), dtype=jnp.float32)
        beta = 0.1 * jax.random.normal(k_beta, (d_in,), dtype=jnp.float32)

        ffn = make_positionwise_ffn(w1, b1, w2, b2, gamma, beta,
                                    matmul_dtype=matmul_dtype)
        out = jax.block_until_ready(ffn(x))
        ref = _reference(x, w1, b1, w2, b2, gamma, beta)
        assert out.shape == x.shape, (out.shape, x.shape)
        err = jnp.max(jnp.abs(out.astype(jnp.float32) - ref))
        assert err < tol, \
            f"mismatch vs reference ({B},{S},{d_in},{d_hid},{matmul_dtype}): {err}"

    k1, k2, k3 = jax.random.split(key, 3)
    # Small unaligned dims: exercises feature padding + E[y^2]-mean^2 LayerNorm path.
    run_case(k1, 2, 8, 32, 64, jnp.float32, 2e-4)
    # Lane-dense dims, f32 matmuls: fast unpadded path, tight tolerance.
    run_case(k2, 2, 8, 128, 256, jnp.float32, 2e-4)
    # bf16 MXU operands (recommended on v6e/v7x): looser tolerance vs f32 reference.
    run_case(k3, 2, 8, 128, 256, jnp.bfloat16, 3e-2)

    print("KERNEL_OK")
</pallas_src>

<mosaic_0001>
module attributes {stable_mosaic.version = 11 : i64} {
  func.func @_ffn_kernel(%arg0: i32, %arg1: i32, %arg2: memref<32x128xf32, #tpu.memory_space<vmem>>, %arg3: memref<128x128xf32, #tpu.memory_space<vmem>>, %arg4: memref<1x128xf32, #tpu.memory_space<vmem>>, %arg5: memref<128x128xf32, #tpu.memory_space<vmem>>, %arg6: memref<1x128xf32, #tpu.memory_space<vmem>>, %arg7: memref<1x128xf32, #tpu.memory_space<vmem>>, %arg8: memref<1x128xf32, #tpu.memory_space<vmem>>, %arg9: memref<32x128xf32, #tpu.memory_space<vmem>>, %arg10: memref<32x128xf32, #tpu.memory_space<vmem>>) attributes {dimension_semantics = [#tpu.dimension_semantics<parallel>, #tpu.dimension_semantics<arbitrary>], iteration_bounds = array<i64: 1, 1>, scalar_prefetch = 0 : i64, scratch_operands = 1 : i64, tpu.core_type = #tpu.core_type<tc>, window_params = [{transform_indices = @transform_0, window_bounds = array<i64: 32, 128>}, {transform_indices = @transform_1, window_bounds = array<i64: 128, 128>}, {transform_indices = @transform_2, window_bounds = array<i64: 1, 128>}, {transform_indices = @transform_3, window_bounds = array<i64: 128, 128>}, {pipeline_mode = #tpu.pipeline_mode<synchronous>, transform_indices = @transform_4, window_bounds = array<i64: 1, 128>}, {pipeline_mode = #tpu.pipeline_mode<synchronous>, transform_indices = @transform_5, window_bounds = array<i64: 1, 128>}, {pipeline_mode = #tpu.pipeline_mode<synchronous>, transform_indices = @transform_6, window_bounds = array<i64: 1, 128>}, {transform_indices = @transform_7, window_bounds = array<i64: 32, 128>}]} {
    %c0_i32 = arith.constant 0 : i32
    %0 = arith.cmpi eq, %arg1, %c0_i32 : i32
    %1 = arith.extui %0 : i1 to i32
    %c0_i32_0 = arith.constant 0 : i32
    %2 = arith.cmpi ne, %1, %c0_i32_0 : i32
    scf.if %2 {
      %cst_16 = arith.constant 0.000000e+00 : f32
      %19 = vector.broadcast %cst_16 : f32 to vector<32x128xf32>
      %c0_17 = arith.constant 0 : index
      %c0_18 = arith.constant 0 : index
      %20 = vector.load %arg10[%c0_17, %c0_18] : memref<32x128xf32, #tpu.memory_space<vmem>>, vector<32x128xf32>
      tpu.vector_store %arg10[%c0_17, %c0_18], %19 {strides = array<i32>} : memref<32x128xf32, #tpu.memory_space<vmem>>, vector<32x128xf32>,
    } else {
    }
    %c0 = arith.constant 0 : index
    %c0_1 = arith.constant 0 : index
    %3 = vector.load %arg2[%c0, %c0_1] : memref<32x128xf32, #tpu.memory_space<vmem>>, vector<32x128xf32>
    %c0_2 = arith.constant 0 : index
    %c0_3 = arith.constant 0 : index
    %4 = vector.load %arg3[%c0_2, %c0_3] : memref<128x128xf32, #tpu.memory_space<vmem>>, vector<128x128xf32>
    %cst = arith.constant dense<0.000000e+00> : vector<32x128xf32>
    %5 = tpu.matmul %3, %4, %cst {dimension_numbers = #tpu.dot_dimension_numbers<[1], [0], [0], [1], [0, 0, 1, 1], [], []>} : vector<32x128xf32>, vector<128x128xf32>, vector<32x128xf32> -> vector<32x128xf32>
    %c0_4 = arith.constant 0 : index
    %c0_5 = arith.constant 0 : index
    %6 = vector.load %arg4[%c0_4, %c0_5] : memref<1x128xf32, #tpu.memory_space<vmem>>, vector<1x128xf32>
    %7 = vector.broadcast %6 : vector<1x128xf32> to vector<32x128xf32>
    %8 = arith.addf %5, %7 : vector<32x128xf32>
    %cst_6 = arith.constant 0.000000e+00 : f32
    %9 = vector.broadcast %cst_6 : f32 to vector<32x128xf32>
    %10 = arith.maximumf %8, %9 : vector<32x128xf32>
    %c0_7 = arith.constant 0 : index
    %c0_8 = arith.constant 0 : index
    %11 = vector.load %arg10[%c0_7, %c0_8] : memref<32x128xf32, #tpu.memory_space<vmem>>, vector<32x128xf32>
    %c0_9 = arith.constant 0 : index
    %c0_10 = arith.constant 0 : index
    %12 = vector.load %arg5[%c0_9, %c0_10] : memref<128x128xf32, #tpu.memory_space<vmem>>, vector<128x128xf32>
    %cst_11 = arith.constant dense<0.000000e+00> : vector<32x128xf32>
    %13 = tpu.matmul %10, %12, %cst_11 {dimension_numbers = #tpu.dot_dimension_numbers<[1], [0], [0], [1], [0, 0, 1, 1], [], []>} : vector<32x128xf32>, vector<128x128xf32>, vector<32x128xf32> -> vector<32x128xf32>
    %14 = arith.addf %11, %13 : vector<32x128xf32>
    %c0_12 = arith.constant 0 : index
    %c0_13 = arith.constant 0 : index
    %15 = vector.load %arg10[%c0_12, %c0_13] : memref<32x128xf32, #tpu.memory_space<vmem>>, vector<32x128xf32>
    tpu.vector_store %arg10[%c0_12, %c0_13], %14 {strides = array<i32>} : memref<32x128xf32, #tpu.memory_space<vmem>>, vector<32x128xf32>,
    %c0_i32_14 = arith.constant 0 : i32
    %16 = arith.cmpi eq, %arg1, %c0_i32_14 : i32
    %17 = arith.extui %16 : i1 to i32
    %c0_i32_15 = arith.constant 0 : i32
    %18 = arith.cmpi ne, %17, %c0_i32_15 : i32
    scf.if %18 {
      %c0_16 = arith.constant 0 : index
      %c0_17 = arith.constant 0 : index
      %19 = vector.load %arg10[%c0_16, %c0_17] : memref<32x128xf32, #tpu.memory_space<vmem>>, vector<32x128xf32>
      %c0_18 = arith.constant 0 : index
      %c0_19 = arith.constant 0 : index
      %20 = vector.load %arg6[%c0_18, %c0_19] : memref<1x128xf32, #tpu.memory_space<vmem>>, vector<1x128xf32>
      %21 = vector.broadcast %20 : vector<1x128xf32> to vector<32x128xf32>
      %22 = arith.addf %19, %21 : vector<32x128xf32>
      %23 = arith.addf %22, %3 : vector<32x128xf32>
      %cst_20 = arith.constant dense<0.000000e+00> : vector<32xf32>
      %24 = vector.multi_reduction <add>, %23, %cst_20 [1] : vector<32x128xf32> to vector<32xf32>
      %25 = vector.shape_cast %24 : vector<32xf32> to vector<32x1xf32>
      %cst_21 = arith.constant 3.125000e-02 : f32
      %26 = vector.broadcast %cst_21 : f32 to vector<32x1xf32>
      %27 = arith.mulf %25, %26 : vector<32x1xf32>
      %28 = arith.mulf %23, %23 : vector<32x128xf32>
      %cst_22 = arith.constant dense<0.000000e+00> : vector<32xf32>
      %29 = vector.multi_reduction <add>, %28, %cst_22 [1] : vector<32x128xf32> to vector<32xf32>
      %30 = vector.shape_cast %29 : vector<32xf32> to vector<32x1xf32>
      %cst_23 = arith.constant 3.125000e-02 : f32
      %31 = vector.broadcast %cst_23 : f32 to vector<32x1xf32>
      %32 = arith.mulf %30, %31 : vector<32x1xf32>
      %33 = arith.mulf %27, %27 : vector<32x1xf32>
      %34 = arith.subf %32, %33 : vector<32x1xf32>
      %35 = vector.broadcast %27 : vector<32x1xf32> to vector<32x128xf32>
      %36 = arith.subf %23, %35 : vector<32x128xf32>
      %cst_24 = arith.constant 9.99999997E-7 : f32
      %37 = vector.broadcast %cst_24 : f32 to vector<32x1xf32>
      %38 = arith.addf %34, %37 : vector<32x1xf32>
      %39 = math.rsqrt %38 : vector<32x1xf32>
      %40 = vector.broadcast %39 : vector<32x1xf32> to vector<32x128xf32>
      %41 = arith.mulf %36, %40 : vector<32x128xf32>
      %c0_25 = arith.constant 0 : index
      %c0_26 = arith.constant 0 : index
      %42 = vector.load %arg7[%c0_25, %c0_26] : memref<1x128xf32, #tpu.memory_space<vmem>>, vector<1x128xf32>
      %43 = vector.broadcast %42 : vector<1x128xf32> to vector<32x128xf32>
      %44 = arith.mulf %41, %43 : vector<32x128xf32>
      %c0_27 = arith.constant 0 : index
      %c0_28 = arith.constant 0 : index
      %45 = vector.load %arg8[%c0_27, %c0_28] : memref<1x128xf32, #tpu.memory_space<vmem>>, vector<1x128xf32>
      %46 = vector.broadcast %45 : vector<1x128xf32> to vector<32x128xf32>
      %47 = arith.addf %44, %46 : vector<32x128xf32>
      %c0_29 = arith.constant 0 : index
      %c0_30 = arith.constant 0 : index
      %48 = vector.load %arg9[%c0_29, %c0_30] : memref<32x128xf32, #tpu.memory_space<vmem>>, vector<32x128xf32>
      tpu.vector_store %arg9[%c0_29, %c0_30], %47 {strides = array<i32>} : memref<32x128xf32, #tpu.memory_space<vmem>>, vector<32x128xf32>,
    } else {
    }
    return
  }
  func.func @transform_0(%arg0: i32, %arg1: i32) -> (i32, i32) {
    %c0_i32 = arith.constant 0 : i32
    %c0_i32_0 = arith.constant 0 : i32
    return %arg0, %c0_i32 : i32, i32
  }
  func.func @transform_1(%arg0: i32, %arg1: i32) -> (i32, i32) {
    %c0_i32 = arith.constant 0 : i32
    %c0_i32_0 = arith.constant 0 : i32
    return %c0_i32, %arg1 : i32, i32
  }
  func.func @transform_2(%arg0: i32, %arg1: i32) -> (i32, i32) {
    %c0_i32 = arith.constant 0 : i32
    %c0_i32_0 = arith.constant 0 : i32
    return %c0_i32, %arg1 : i32, i32
  }
  func.func @transform_3(%arg0: i32, %arg1: i32) -> (i32, i32) {
    %c0_i32 = arith.constant 0 : i32
    %c0_i32_0 = arith.constant 0 : i32
    return %arg1, %c0_i32 : i32, i32
  }
  func.func @transform_4(%arg0: i32, %arg1: i32) -> (i32, i32) {
    %c0_i32 = arith.constant 0 : i32
    %c0_i32_0 = arith.constant 0 : i32
    %c0_i32_1 = arith.constant 0 : i32
    return %c0_i32, %c0_i32_0 : i32, i32
  }
  func.func @transform_5(%arg0: i32, %arg1: i32) -> (i32, i32) {
    %c0_i32 = arith.constant 0 : i32
    %c0_i32_0 = arith.constant 0 : i32
    %c0_i32_1 = arith.constant 0 : i32
    return %c0_i32, %c0_i32_0 : i32, i32
  }
  func.func @transform_6(%arg0: i32, %arg1: i32) -> (i32, i32) {
    %c0_i32 = arith.constant 0 : i32
    %c0_i32_0 = arith.constant 0 : i32
    %c0_i32_1 = arith.constant 0 : i32
    return %c0_i32, %c0_i32_0 : i32, i32
  }
  func.func @transform_7(%arg0: i32, %arg1: i32) -> (i32, i32) {
    %c0_i32 = arith.constant 0 : i32
    %c0_i32_0 = arith.constant 0 : i32
    return %arg0, %c0_i32 : i32, i32
  }
}

</mosaic_0001>

<llo_original>
// kernel: apply.1
$region0: #{apply.1}
  #allocation0 [shape = 'u32[]', space=smem, size = 0x4, offset = 0x4, fixed_abs, tag = 'smem constant byte address 0x4 - core index']
  #allocation1 [shape = 'u32[144,128]{1,0:T(1,128)}', space=vmem, size = 0x12000, scoped, tag = 'internal scratch']
  #allocation2 [shape = 'f32[32,128]{1,0:T(8,128)}', space=vmem, size = 0x4000, scoped, tag = 'scratch operand']
  %s0 = inlined_call_operand.vmem [shape: f32[32,128], index: 0, kind: input, shape index: {}]
  %s1 = inlined_call_operand.hbm [shape: f32[128,128], index: 1, kind: input, shape index: {}]
  %s2 = inlined_call_operand.vmem [shape: f32[1,128], index: 2, kind: input, shape index: {}]
  %s3 = inlined_call_operand.hbm [shape: f32[128,128], index: 3, kind: input, shape index: {}]
  %s4 = inlined_call_operand.vmem [shape: f32[1,128], index: 4, kind: input, shape index: {}]
  %s5 = inlined_call_operand.vmem [shape: f32[1,128], index: 5, kind: input, shape index: {}]
  %s6 = inlined_call_operand.vmem [shape: f32[1,128], index: 6, kind: input, shape index: {}]
  %s7 = inlined_call_operand.vmem [shape: f32[32,128], index: 7, kind: output, shape index: {}]
  %s8 = sld [smem:[#allocation0]]
  $region54: #{apply.1} parent=0
    _
  %s10 = ssub.s32 1, %s8
  %s11 = scalar_select 0, %s10, %s8
  $region1: #{apply.1} parent=0
    #allocation3 [shape = 'u8[65536]{0}', space=vmem, size = 0x10000, scoped, tag = 'input window, operand 1, single buffered']
    #allocation4 [shape = 's32[1]{0}', space=sflag, size = 0x4, scoped, tag = 'scoped memory for apply.1']
    #allocation5 [shape = 'u8[65536]{0}', space=vmem, size = 0x10000, scoped, tag = 'input window, operand 3, single buffered']
    #allocation6 [shape = 's32[1]{0}', space=sflag, size = 0x4, scoped, tag = 'scoped memory for apply.1']
    %12 = vsyncpa [#allocation4], 0
    %13 = vsyncpa [#allocation6], 0
    // Predicated region
    $region2: #{apply.1} parent=1 // pred_check
      _
    $region3: #{apply.1} parent=1 // pred_check_branch
      %15 = sbr.rel (0) target = $region5
    $region4: #{apply.1} parent=1 // pred_region
      _
    $region5: #{apply.1} parent=1 // pred_fallthru
      _
    // Predicated region
    $region6: #{apply.1} parent=1 // pred_check
      _
    $region7: #{apply.1} parent=1 // pred_check_branch
      %17 = sbr.rel (0) target = $region9
    $region8: #{apply.1} parent=1 // pred_region
      %s19 = ssub.s32 2048, 2048
      %20 = vsyncadd [#allocation4], %s19
      %s21 = sshll.u32 [#allocation3], 4
      %s22 = int_to_ptr.vmem [resolvable:$true] %s21
      %27 = dma.hbm_to_vmem [thread:$0]  %s1, 2048, %s22, [#allocation4], 128, 128, 8
    $region9: #{apply.1} parent=1 // pred_fallthru
      _
    // Predicated region
    $region10: #{apply.1} parent=1 // pred_check
      _
    $region11: #{apply.1} parent=1 // pred_check_branch
      %29 = sbr.rel (0) target = $region13
    $region12: #{apply.1} parent=1 // pred_region
      _
    $region13: #{apply.1} parent=1 // pred_fallthru
      _
    // Predicated region
    $region14: #{apply.1} parent=1 // pred_check
      _
    $region15: #{apply.1} parent=1 // pred_check_branch
      %31 = sbr.rel (0) target = $region17
    $region16: #{apply.1} parent=1 // pred_region
      %s33 = ssub.s32 2048, 2048
      %34 = vsyncadd [#allocation6], %s33
      %s35 = sshll.u32 [#allocation5], 4
      %s36 = int_to_ptr.vmem [resolvable:$true] %s35
      %41 = dma.hbm_to_vmem [thread:$0]  %s3, 2048, %s36, [#allocation6], 128, 128, 8
    $region17: #{apply.1} parent=1 // pred_fallthru
      _
    // Predicated region
    $region18: #{apply.1} parent=1 // pred_check
      _
    $region19: #{apply.1} parent=1 // pred_check_branch
      %43 = sbr.rel (0) target = $region21
    $region20: #{apply.1} parent=1 // pred_region
      _
    $region21: #{apply.1} parent=1 // pred_fallthru
      _
    // Predicated region
    $region22: #{apply.1} parent=1 // pred_check
      _
    $region23: #{apply.1} parent=1 // pred_check_branch
      %45 = sbr.rel (0) target = $region25
    $region24: #{apply.1} parent=1 // pred_region
      _
    $region25: #{apply.1} parent=1 // pred_fallthru
      _
    // Predicated region
    $region26: #{apply.1} parent=1 // pred_check
      _
    $region27: #{apply.1} parent=1 // pred_check_branch
      %47 = sbr.rel (0) target = $region29
    $region28: #{apply.1} parent=1 // pred_region
      _
    $region29: #{apply.1} parent=1 // pred_fallthru
      _
    // Predicated region
    $region30: #{apply.1} parent=1 // pred_check
      _
    $region31: #{apply.1} parent=1 // pred_check_branch
      %49 = sbr.rel (0) target = $region33
    $region32: #{apply.1} parent=1 // pred_region
      %50 = dma.done [#allocation4], 2048
    $region33: #{apply.1} parent=1 // pred_fallthru
      _
    // Predicated region
    $region34: #{apply.1} parent=1 // pred_check
      _
    $region35: #{apply.1} parent=1 // pred_check_branch
      %52 = sbr.rel (0) target = $region37
    $region36: #{apply.1} parent=1 // pred_region
      %53 = dma.done [#allocation6], 2048
    $region37: #{apply.1} parent=1 // pred_fallthru
      _
    %p54 = scmp.eq.s32.totalorder 0, 0
    // Predicated region
    $region38: #{apply.1} parent=1 // pred_check
      %p55 = pneg %p54
    $region39: #{apply.1} parent=1 // pred_check_branch
      %57 = sbr.rel (%p55) target = $region41
    $region40: #{apply.1} parent=1 // pred_region
      %58 = vst [vmem:[#allocation2] sm:$0xff] 0.0
      %59 = vst [vmem:[#allocation2 + $0x8] sm:$0xff] 0.0
      %60 = vst [vmem:[#allocation2 + $0x10] sm:$0xff] 0.0
      %61 = vst [vmem:[#allocation2 + $0x18] sm:$0xff] 0.0
    $region41: #{apply.1} parent=1 // pred_fallthru
      _
    %v62 = vld [vmem:[%s0] sm:$0xff]
    %v63 = vld [vmem:[%s0 + $0x8] sm:$0xff]
    %v64 = vld [vmem:[%s0 + $0x10] sm:$0xff]
    %v65 = vld [vmem:[%s0 + $0x18] sm:$0xff]
    %v66 = vld [vmem:[#allocation3] sm:$0xff]
    %v67 = vld [vmem:[#allocation3 + $0x8] sm:$0xff]
    %v68 = vld [vmem:[#allocation3 + $0x10] sm:$0xff]
    %v69 = vld [vmem:[#allocation3 + $0x18] sm:$0xff]
    %v70 = vld [vmem:[#allocation3 + $0x20] sm:$0xff]
    %v71 = vld [vmem:[#allocation3 + $0x28] sm:$0xff]
    %v72 = vld [vmem:[#allocation3 + $0x30] sm:$0xff]
    %v73 = vld [vmem:[#allocation3 + $0x38] sm:$0xff]
    %v74 = vld [vmem:[#allocation3 + $0x40] sm:$0xff]
    %v75 = vld [vmem:[#allocation3 + $0x48] sm:$0xff]
    %v76 = vld [vmem:[#allocation3 + $0x50] sm:$0xff]
    %v77 = vld [vmem:[#allocation3 + $0x58] sm:$0xff]
    %v78 = vld [vmem:[#allocation3 + $0x60] sm:$0xff]
    %v79 = vld [vmem:[#allocation3 + $0x68] sm:$0xff]
    %v80 = vld [vmem:[#allocation3 + $0x70] sm:$0xff]
    %v81 = vld [vmem:[#allocation3 + $0x78] sm:$0xff]
    %v82 = vld [vmem:[%s2] sm:$0x1]
    %v84 = vlaneseq
    %v85 = vshrl.u32 %v84, 7
    %v86 = vsub.s32 0, %v85
    %v87 = vrot.slane %v82, %v86
    %89 = vmatprep.subr.mxu0 0.0
    %90 = vmatpush1.msra.mxu0 %v66
    %91 = vmatprep.subr.mxu0 0.0
    %92 = vmatpush1.msra.mxu0 %v67
    %93 = vmatprep.subr.mxu0 0.0
    %94 = vmatpush1.msra.mxu0 %v68
    %95 = vmatprep.subr.mxu0 0.0
    %96 = vmatpush1.msra.mxu0 %v69
    %97 = vmatprep.subr.mxu0 0.0
    %98 = vmatpush1.msra.mxu0 %v70
    %99 = vmatprep.subr.mxu0 0.0
    %100 = vmatpush1.msra.mxu0 %v71
    %101 = vmatprep.subr.mxu0 0.0
    %102 = vmatpush1.msra.mxu0 %v72
    %103 = vmatprep.subr.mxu0 0.0
    %104 = vmatpush1.msra.mxu0 %v73
    %105 = vmatprep.subr.mxu0 0.0
    %106 = vmatpush1.msra.mxu0 %v74
    %107 = vmatprep.subr.mxu0 0.0
    %108 = vmatpush1.msra.mxu0 %v75
    %109 = vmatprep.subr.mxu0 0.0
    %110 = vmatpush1.msra.mxu0 %v76
    %111 = vmatprep.subr.mxu0 0.0
    %112 = vmatpush1.msra.mxu0 %v77
    %113 = vmatprep.subr.mxu0 0.0
    %114 = vmatpush1.msra.mxu0 %v78
    %115 = vmatprep.subr.mxu0 0.0
    %116 = vmatpush1.msra.mxu0 %v79
    %117 = vmatprep.subr.mxu0 0.0
    %118 = vmatpush1.msra.mxu0 %v80
    %119 = vmatprep.subr.mxu0 0.0
    %120 = vmatpush1.msra.mxu0 %v81
    %121 = vmatprep.subr.mxu0 0.0
    %122 = vmatpush1.msra.mxu0 0.0
    %123 = vmatprep.subr.mxu0 0.0
    %124 = vmatpush1.msra.mxu0 0.0
    %125 = vmatprep.subr.mxu0 0.0
    %126 = vmatpush1.msra.mxu0 0.0
    %127 = vmatprep.subr.mxu0 0.0
    %128 = vmatpush1.msra.mxu0 0.0
    %129 = vmatprep.subr.mxu0 0.0
    %130 = vmatpush1.msra.mxu0 0.0
    %131 = vmatprep.subr.mxu0 0.0
    %132 = vmatpush1.msra.mxu0 0.0
    %133 = vmatprep.subr.mxu0 0.0
    %134 = vmatpush1.msra.mxu0 0.0
    %135 = vmatprep.subr.mxu0 0.0
    %136 = vmatpush1.msra.mxu0 0.0
    %137 = vmatprep.subr.mxu0 0.0
    %138 = vmatpush1.msra.mxu0 0.0
    %139 = vmatprep.subr.mxu0 0.0
    %140 = vmatpush1.msra.mxu0 0.0
    %141 = vmatprep.subr.mxu0 0.0
    %142 = vmatpush1.msra.mxu0 0.0
    %143 = vmatprep.subr.mxu0 0.0
    %144 = vmatpush1.msra.mxu0 0.0
    %145 = vmatprep.subr.mxu0 0.0
    %146 = vmatpush1.msra.mxu0 0.0
    %147 = vmatprep.subr.mxu0 0.0
    %148 = vmatpush1.msra.mxu0 0.0
    %149 = vmatprep.subr.mxu0 0.0
    %150 = vmatpush1.msra.mxu0 0.0
    %151 = vmatprep.subr.mxu0 0.0
    %152 = vmatpush1.msra.mxu0 0.0
    %153 = vmatprep.mubr.f32.mxu0 0.0
    %154 = vmatmul.mubr.f32.gmra.mrb[0].mxu0 %v62
    %v155 = vpop.f32.mrb[0].mxu0
    %v156 = vadd.f32 %v87, %v155
    %v157 = vpop.f32.mrb[0].mxu0
    %158 = vmatprep.mubr.f32.mxu0 0.0
    %159 = vmatmul.mubr.f32.gmra.mrb[0].mxu0 %v63
    %v160 = vpop.f32.mrb[0].mxu0
    %v161 = vadd.f32 %v87, %v160
    %v162 = vpop.f32.mrb[0].mxu0
    %163 = vmatprep.mubr.f32.mxu0 0.0
    %164 = vmatmul.mubr.f32.gmra.mrb[0].mxu0 %v64
    %v165 = vpop.f32.mrb[0].mxu0
    %v166 = vadd.f32 %v87, %v165
    %v167 = vpop.f32.mrb[0].mxu0
    %168 = vmatprep.mubr.f32.mxu0 0.0
    %169 = vmatmul.mubr.f32.gmra.mrb[0].mxu0 %v65
    %v170 = vpop.f32.mrb[0].mxu0
    %v171 = vadd.f32 %v87, %v170
    %v172 = vpop.f32.mrb[0].mxu0
    %173 = vdwg.mxu0
    %v174 = vmax.f32 %v156, 0.0
    %v175 = vmax.f32 %v161, 0.0
    %v176 = vmax.f32 %v166, 0.0
    %v177 = vmax.f32 %v171, 0.0
    %v178 = vld [vmem:[#allocation2] sm:$0xff]
    %v179 = vld [vmem:[#allocation2 + $0x8] sm:$0xff]
    %v180 = vld [vmem:[#allocation2 + $0x10] sm:$0xff]
    %v181 = vld [vmem:[#allocation2 + $0x18] sm:$0xff]
    %v182 = vld [vmem:[#allocation5] sm:$0xff]
    %v183 = vld [vmem:[#allocation5 + $0x8] sm:$0xff]
    %v184 = vld [vmem:[#allocation5 + $0x10] sm:$0xff]
    %v185 = vld [vmem:[#allocation5 + $0x18] sm:$0xff]
    %v186 = vld [vmem:[#allocation5 + $0x20] sm:$0xff]
    %v187 = vld [vmem:[#allocation5 + $0x28] sm:$0xff]
    %v188 = vld [vmem:[#allocation5 + $0x30] sm:$0xff]
    %v189 = vld [vmem:[#allocation5 + $0x38] sm:$0xff]
    %v190 = vld [vmem:[#allocation5 + $0x40] sm:$0xff]
    %v191 = vld [vmem:[#allocation5 + $0x48] sm:$0xff]
    %v192 = vld [vmem:[#allocation5 + $0x50] sm:$0xff]
    %v193 = vld [vmem:[#allocation5 + $0x58] sm:$0xff]
    %v194 = vld [vmem:[#allocation5 + $0x60] sm:$0xff]
    %v195 = vld [vmem:[#allocation5 + $0x68] sm:$0xff]
    %v196 = vld [vmem:[#allocation5 + $0x70] sm:$0xff]
    %v197 = vld [vmem:[#allocation5 + $0x78] sm:$0xff]
    %198 = vmatprep.subr.mxu0 0.0
    %199 = vmatpush1.msra.mxu0 %v182
    %200 = vmatprep.subr.mxu0 0.0
    %201 = vmatpush1.msra.mxu0 %v183
    %202 = vmatprep.subr.mxu0 0.0
    %203 = vmatpush1.msra.mxu0 %v184
    %204 = vmatprep.subr.mxu0 0.0
    %205 = vmatpush1.msra.mxu0 %v185
    %206 = vmatprep.subr.mxu0 0.0
    %207 = vmatpush1.msra.mxu0 %v186
    %208 = vmatprep.subr.mxu0 0.0
    %209 = vmatpush1.msra.mxu0 %v187
    %210 = vmatprep.subr.mxu0 0.0
    %211 = vmatpush1.msra.mxu0 %v188
    %212 = vmatprep.subr.mxu0 0.0
    %213 = vmatpush1.msra.mxu0 %v189
    %214 = vmatprep.subr.mxu0 0.0
    %215 = vmatpush1.msra.mxu0 %v190
    %216 = vmatprep.subr.mxu0 0.0
    %217 = vmatpush1.msra.mxu0 %v191
    %218 = vmatprep.subr.mxu0 0.0
    %219 = vmatpush1.msra.mxu0 %v192
    %220 = vmatprep.subr.mxu0 0.0
    %221 = vmatpush1.msra.mxu0 %v193
    %222 = vmatprep.subr.mxu0 0.0
    %223 = vmatpush1.msra.mxu0 %v194
    %224 = vmatprep.subr.mxu0 0.0
    %225 = vmatpush1.msra.mxu0 %v195
    %226 = vmatprep.subr.mxu0 0.0
    %227 = vmatpush1.msra.mxu0 %v196
    %228 = vmatprep.subr.mxu0 0.0
    %229 = vmatpush1.msra.mxu0 %v197
    %230 = vmatprep.subr.mxu0 0.0
    %231 = vmatpush1.msra.mxu0 0.0
    %232 = vmatprep.subr.mxu0 0.0
    %233 = vmatpush1.msra.mxu0 0.0
    %234 = vmatprep.subr.mxu0 0.0
    %235 = vmatpush1.msra.mxu0 0.0
    %236 = vmatprep.subr.mxu0 0.0
    %237 = vmatpush1.msra.mxu0 0.0
    %238 = vmatprep.subr.mxu0 0.0
    %239 = vmatpush1.msra.mxu0 0.0
    %240 = vmatprep.subr.mxu0 0.0
    %241 = vmatpush1.msra.mxu0 0.0
    %242 = vmatprep.subr.mxu0 0.0
    %243 = vmatpush1.msra.mxu0 0.0
    %244 = vmatprep.subr.mxu0 0.0
    %245 = vmatpush1.msra.mxu0 0.0
    %246 = vmatprep.subr.mxu0 0.0
    %247 = vmatpush1.msra.mxu0 0.0
    %248 = vmatprep.subr.mxu0 0.0
    %249 = vmatpush1.msra.mxu0 0.0
    %250 = vmatprep.subr.mxu0 0.0
    %251 = vmatpush1.msra.mxu0 0.0
    %252 = vmatprep.subr.mxu0 0.0
    %253 = vmatpush1.msra.mxu0 0.0
    %254 = vmatprep.subr.mxu0 0.0
    %255 = vmatpush1.msra.mxu0 0.0
    %256 = vmatprep.subr.mxu0 0.0
    %257 = vmatpush1.msra.mxu0 0.0
    %258 = vmatprep.subr.mxu0 0.0
    %259 = vmatpush1.msra.mxu0 0.0
    %260 = vmatprep.subr.mxu0 0.0
    %261 = vmatpush1.msra.mxu0 0.0
    %262 = vmatprep.mubr.f32.mxu0 0.0
    %263 = vmatmul.mubr.f32.gmra.mrb[0].mxu0 %v174
    %v264 = vpop.f32.mrb[0].mxu0
    %v265 = vadd.f32 0.0, %v264
    %v266 = vpop.f32.mrb[0].mxu0
    %267 = vmatprep.mubr.f32.mxu0 0.0
    %268 = vmatmul.mubr.f32.gmra.mrb[0].mxu0 %v175
    %v269 = vpop.f32.mrb[0].mxu0
    %v270 = vadd.f32 0.0, %v269
    %v271 = vpop.f32.mrb[0].mxu0
    %272 = vmatprep.mubr.f32.mxu0 0.0
    %273 = vmatmul.mubr.f32.gmra.mrb[0].mxu0 %v176
    %v274 = vpop.f32.mrb[0].mxu0
    %v275 = vadd.f32 0.0, %v274
    %v276 = vpop.f32.mrb[0].mxu0
    %277 = vmatprep.mubr.f32.mxu0 0.0
    %278 = vmatmul.mubr.f32.gmra.mrb[0].mxu0 %v177
    %v279 = vpop.f32.mrb[0].mxu0
    %v280 = vadd.f32 0.0, %v279
    %v281 = vpop.f32.mrb[0].mxu0
    %282 = vdwg.mxu0
    %v283 = vadd.f32 %v178, %v265
    %v284 = vadd.f32 %v179, %v270
    %v285 = vadd.f32 %v180, %v275
    %v286 = vadd.f32 %v181, %v280
    %287 = vst [vmem:[#allocation2] sm:$0xff] %v283
    %288 = vst [vmem:[#allocation2 + $0x8] sm:$0xff] %v284
    %289 = vst [vmem:[#allocation2 + $0x10] sm:$0xff] %v285
    %290 = vst [vmem:[#allocation2 + $0x18] sm:$0xff] %v286
    // Predicated region
    $region42: #{apply.1} parent=1 // pred_check
      %p291 = pneg %p54
    $region43: #{apply.1} parent=1 // pred_check_branch
      %293 = sbr.rel (%p291) target = $region45
    $region44: #{apply.1} parent=1 // pred_region
      %v294 = vld [vmem:[#allocation2] sm:$0xff]
      %v295 = vld [vmem:[#allocation2 + $0x8] sm:$0xff]
      %v296 = vld [vmem:[#allocation2 + $0x10] sm:$0xff]
      %v297 = vld [vmem:[#allocation2 + $0x18] sm:$0xff]
      %v298 = vld [vmem:[%s4] sm:$0x1]
      %v300 = vlaneseq
      %v301 = vshrl.u32 %v300, 7
      %v302 = vsub.s32 0, %v301
      %v303 = vrot.slane %v298, %v302
      %v305 = vadd.f32 %v294, %v303
      %v306 = vadd.f32 %v295, %v303
      %v307 = vadd.f32 %v296, %v303
      %v308 = vadd.f32 %v297, %v303
      %v309 = vadd.f32 %v305, %v62
      %v310 = vadd.f32 %v306, %v63
      %v311 = vadd.f32 %v307, %v64
      %v312 = vadd.f32 %v308, %v65
      %313 = vadd.xlane.f32.xlu0 %v309
      %v314 = vpop.xlane.xlu0 %313
      %315 = vadd.xlane.f32.xlu0 %v310
      %v316 = vpop.xlane.xlu0 %315
      %317 = vadd.xlane.f32.xlu0 %v311
      %v318 = vpop.xlane.xlu0 %317
      %319 = vadd.xlane.f32.xlu0 %v312
      %v320 = vpop.xlane.xlu0 %319
      %v321 = vmul.f32 %v314, 0.03125
      %v322 = vmul.f32 %v316, 0.03125
      %v323 = vmul.f32 %v318, 0.03125
      %v324 = vmul.f32 %v320, 0.03125
      %v325 = vmul.f32 %v309, %v309
      %v326 = vmul.f32 %v310, %v310
      %v327 = vmul.f32 %v311, %v311
      %v328 = vmul.f32 %v312, %v312
      %329 = vadd.xlane.f32.xlu0 %v325
      %v330 = vpop.xlane.xlu0 %329
      %331 = vadd.xlane.f32.xlu0 %v326
      %v332 = vpop.xlane.xlu0 %331
      %333 = vadd.xlane.f32.xlu0 %v327
      %v334 = vpop.xlane.xlu0 %333
      %335 = vadd.xlane.f32.xlu0 %v328
      %v336 = vpop.xlane.xlu0 %335
      %v337 = vmul.f32 %v330, 0.03125
      %v338 = vmul.f32 %v332, 0.03125
      %v339 = vmul.f32 %v334, 0.03125
      %v340 = vmul.f32 %v336, 0.03125
      %v341 = vmul.f32 %v321, %v321
      %v342 = vmul.f32 %v322, %v322
      %v343 = vmul.f32 %v323, %v323
      %v344 = vmul.f32 %v324, %v324
      %v345 = vsub.f32 %v337, %v341
      %v346 = vsub.f32 %v338, %v342
      %v347 = vsub.f32 %v339, %v343
      %v348 = vsub.f32 %v340, %v344
      %v349 = vsub.f32 %v309, %v321
      %v350 = vsub.f32 %v310, %v322
      %v351 = vsub.f32 %v311, %v323
      %v352 = vsub.f32 %v312, %v324
      %v353 = vadd.f32 %v345, 1e-06
      %v354 = vadd.f32 %v346, 1e-06
      %v355 = vadd.f32 %v347, 1e-06
      %v356 = vadd.f32 %v348, 1e-06
      %v357 = vrsqrt.pop %v353
      %v358 = vrsqrt.pop %v354
      %v359 = vrsqrt.pop %v355
      %v360 = vrsqrt.pop %v356
      %v361 = vmul.f32 %v349, %v357
      %v362 = vmul.f32 %v350, %v358
      %v363 = vmul.f32 %v351, %v359
      %v364 = vmul.f32 %v352, %v360
      %v365 = vld [vmem:[%s5] sm:$0x1]
      %v367 = vlaneseq
      %v368 = vshrl.u32 %v367, 7
      %v369 = vsub.s32 0, %v368
      %v370 = vrot.slane %v365, %v369
      %v372 = vmul.f32 %v361, %v370
      %v373 = vmul.f32 %v362, %v370
      %v374 = vmul.f32 %v363, %v370
      %v375 = vmul.f32 %v364, %v370
      %v376 = vld [vmem:[%s6] sm:$0x1]
      %v378 = vlaneseq
      %v379 = vshrl.u32 %v378, 7
      %v380 = vsub.s32 0, %v379
      %v381 = vrot.slane %v376, %v380
      %v383 = vadd.f32 %v372, %v381
      %v384 = vadd.f32 %v373, %v381
      %v385 = vadd.f32 %v374, %v381
      %v386 = vadd.f32 %v375, %v381
      %387 = vst [vmem:[%s7] sm:$0xff] %v383
      %388 = vst [vmem:[%s7 + $0x8] sm:$0xff] %v384
      %389 = vst [vmem:[%s7 + $0x10] sm:$0xff] %v385
      %390 = vst [vmem:[%s7 + $0x18] sm:$0xff] %v386
    $region45: #{apply.1} parent=1 // pred_fallthru
      _
    // Predicated region
    $region46: #{apply.1} parent=1 // pred_check
      _
    $region47: #{apply.1} parent=1 // pred_check_branch
      %392 = sbr.rel (0) target = $region49
    $region48: #{apply.1} parent=1 // pred_region
      _
    $region49: #{apply.1} parent=1 // pred_fallthru
      _
    // Predicated region
    $region50: #{apply.1} parent=1 // pred_check
      _
    $region51: #{apply.1} parent=1 // pred_check_branch
      %394 = sbr.rel (0) target = $region53
    $region52: #{apply.1} parent=1 // pred_region
      _
    $region53: #{apply.1} parent=1 // pred_fallthru
      _
    %395 = vsyncpa [#allocation4], 1
    %396 = vsyncpa [#allocation6], 1

</llo_original>
